<compile_context>
chip_gen: v5e
topology: v5e:2x2
jax: 0.10.0
libtpu: 0.0.40
codegen_flags: <defaults>
</compile_context>

<pallas_src>
import functools
import math

import jax
import jax.numpy as jnp
from jax.experimental import pallas as pl
from jax.experimental.pallas import tpu as pltpu

LANE = 128
SUB = 8
CHUNK_ROWS = 512          # 512 x 128 f32 = 256 KiB per in-loop intermediate


def _target_block_bytes():
    """Per-input DMA bytes per grid step, sized against default scoped VMEM."""
    try:
        kind = jax.devices()[0].device_kind.lower()
    except Exception:
        kind = ""
    if "v6" in kind or "v7" in kind:
        return 4 << 20        # v6e / v7x: 32 MiB default scoped VMEM
    return 2 << 20            # v5e (16 MiB default scoped) / unknown: be safe


def _wing_loss_kernel(pred_ref, target_ref, partial_ref, *,
                      omega, inv_eps, C, rows, block_rows, chunk_rows):
    i = pl.program_id(0)
    num_chunks = block_rows // chunk_rows

    def chunk_partial(j, masked):
        r0 = pl.multiple_of(j * chunk_rows, chunk_rows)
        p = pred_ref[pl.ds(r0, chunk_rows), :].astype(jnp.float32)
        t = target_ref[pl.ds(r0, chunk_rows), :].astype(jnp.float32)
        d = jnp.abs(t - p)
        # d / epsilon -> d * (1/epsilon): only the mandatory log on the EUP.
        loss = jnp.where(d < omega, omega * jnp.log(1.0 + d * inv_eps), d - C)
        if masked:
            # Last block only: rows past `rows` hold stale VMEM -> zero them.
            row = (jax.lax.broadcasted_iota(jnp.int32, d.shape, 0)
                   + i * block_rows + r0)
            loss = jnp.where(row < rows, loss, 0.0)
        # Fold whole (8,128) vreg tiles: pure VPU adds, no cross-lane XLU.
        return jnp.sum(loss.reshape(-1, SUB, LANE), axis=0)

    def accumulate(masked):
        def body(j, acc):
            return acc + chunk_partial(j, masked)
        acc = jax.lax.fori_loop(0, num_chunks, body,
                                jnp.zeros((SUB, LANE), jnp.float32))
        partial_ref[...] = acc[None]

    last = pl.num_programs(0) - 1

    @pl.when(i < last)        # interior blocks: fully valid, unmasked fast path
    def _():
        accumulate(masked=False)

    @pl.when(i == last)       # tail block: mask rows >= `rows`
    def _():
        accumulate(masked=True)


def wing_loss(pred, target, omega=10.0, epsilon=2.0):
    assert pred.shape == target.shape
    n = pred.size
    omega = float(omega)
    epsilon = float(epsilon)
    inv_eps = 1.0 / epsilon
    C = omega - omega * math.log(1.0 + omega / epsilon)

    p_flat = pred.reshape(-1)
    t_flat = target.reshape(-1)

    rows = n // LANE
    n_bulk = rows * LANE
    rem = n - n_bulk

    total = jnp.float32(0.0)

    if rows > 0:
        if rem:
            p_bulk = jax.lax.slice(p_flat, (0,), (n_bulk,))
            t_bulk = jax.lax.slice(t_flat, (0,), (n_bulk,))
        else:
            p_bulk, t_bulk = p_flat, t_flat
        p2 = p_bulk.reshape(rows, LANE)
        t2 = t_bulk.reshape(rows, LANE)

        itemsize = jnp.dtype(pred.dtype).itemsize
        # Bytes-based target (bf16 gets 2x the rows of f32), multiple of CHUNK.
        target_rows = max(CHUNK_ROWS,
                          (_target_block_bytes() // (LANE * itemsize))
                          // CHUNK_ROWS * CHUNK_ROWS)

        # Split into >= 2 blocks whenever possible so v7x can use both TCs.
        block_rows = min(target_rows, pl.cdiv(rows, 2))
        if block_rows >= CHUNK_ROWS:
            chunk_rows = CHUNK_ROWS
            block_rows = min(pl.cdiv(block_rows, CHUNK_ROWS) * CHUNK_ROWS,
                             target_rows)
        else:
            block_rows = pl.cdiv(block_rows, SUB) * SUB
            chunk_rows = block_rows
        grid = pl.cdiv(rows, block_rows)

        kernel = functools.partial(
            _wing_loss_kernel, omega=omega, inv_eps=inv_eps, C=C,
            rows=rows, block_rows=block_rows, chunk_rows=chunk_rows)

        cost = pl.CostEstimate(
            flops=8 * n_bulk,
            transcendentals=n_bulk,
            bytes_accessed=2 * n_bulk * itemsize + grid * SUB * LANE * 4,
        )

        partials = pl.pallas_call(
            kernel,
            out_shape=jax.ShapeDtypeStruct((grid, SUB, LANE), jnp.float32),
            grid=(grid,),
            in_specs=[
                pl.BlockSpec((block_rows, LANE), lambda i: (i, 0)),
                pl.BlockSpec((block_rows, LANE), lambda i: (i, 0)),
            ],
            out_specs=pl.BlockSpec((1, SUB, LANE), lambda i: (i, 0, 0)),
            compiler_params=pltpu.CompilerParams(
                dimension_semantics=("parallel",)),
            cost_estimate=cost,
        )(p2, t2)
        total = total + jnp.sum(partials)

    if rem:
        # < 128-element lane tail: plain jnp (tiny, fused by XLA; no big copy).
        p_tail = jax.lax.slice(p_flat, (n_bulk,), (n,)).astype(jnp.float32)
        t_tail = jax.lax.slice(t_flat, (n_bulk,), (n,)).astype(jnp.float32)
        d = jnp.abs(t_tail - p_tail)
        tail = jnp.where(d < omega, omega * jnp.log(1.0 + d * inv_eps), d - C)
        total = total + jnp.sum(tail)

    # NOTE: n == 0 yields NaN, matching the reference module's divide-by-zero.
    return total / jnp.float32(n)


def _wing_loss_ref(pred, target, omega=10.0, epsilon=2.0):
    d = jnp.abs(target.astype(jnp.float32) - pred.astype(jnp.float32))
    C = omega - omega * math.log(1.0 + omega / epsilon)
    loss = jnp.where(d < omega, omega * jnp.log(1.0 + d / epsilon), d - C)
    return jnp.mean(loss)


if __name__ == "__main__":
    key = jax.random.PRNGKey(0)
    k1, k2 = jax.random.split(key)
    # Small NCHW-like shapes (e.g. landmark heatmaps / coords)
    shape = (2, 4, 16, 16)
    # Scale so both branches (|d| < omega and |d| >= omega) are exercised.
    pred = jax.random.normal(k1, shape, dtype=jnp.float32) * 8.0
    target = jax.random.normal(k2, shape, dtype=jnp.float32) * 8.0

    out = wing_loss(pred, target, omega=10.0, epsilon=2.0)
    out = jax.block_until_ready(out)

    ref = jax.block_until_ready(_wing_loss_ref(pred, target))
    assert jnp.allclose(out, ref, rtol=1e-5, atol=1e-5), (out, ref)

    # Lane-unaligned / block-tail case: exercises the tail-block row mask
    # and the wrapper-side <128-element lane tail.
    shape2 = (3, 5, 7, 11)  # n = 1155, not a multiple of 128
    q1, q2 = jax.random.split(k2)
    pred2 = jax.random.normal(q1, shape2, dtype=jnp.float32) * 8.0
    target2 = jax.random.normal(q2, shape2, dtype=jnp.float32) * 8.0
    out2 = jax.block_until_ready(wing_loss(pred2, target2))
    ref2 = jax.block_until_ready(_wing_loss_ref(pred2, target2))
    assert jnp.allclose(out2, ref2, rtol=1e-5, atol=1e-5), (out2, ref2)

    print("KERNEL_OK")
</pallas_src>

<mosaic_0001>
module attributes {stable_mosaic.version = 11 : i64} {
  func.func @_wing_loss_kernel(%arg0: i32, %arg1: memref<8x128xf32, #tpu.memory_space<vmem>>, %arg2: memref<8x128xf32, #tpu.memory_space<vmem>>, %arg3: memref<1x8x128xf32, #tpu.memory_space<vmem>>) attributes {dimension_semantics = [#tpu.dimension_semantics<parallel>], iteration_bounds = array<i64: 2>, scalar_prefetch = 0 : i64, scratch_operands = 0 : i64, tpu.core_type = #tpu.core_type<tc>, window_params = [{transform_indices = @transform_0, window_bounds = array<i64: 8, 128>}, {transform_indices = @transform_1, window_bounds = array<i64: 8, 128>}, {transform_indices = @transform_2, window_bounds = array<i64: 1, 8, 128>}]} {
    %c1_i32 = arith.constant 1 : i32
    %0 = arith.cmpi slt, %arg0, %c1_i32 : i32
    %1 = arith.extui %0 : i1 to i32
    %c0_i32 = arith.constant 0 : i32
    %2 = arith.cmpi ne, %1, %c0_i32 : i32
    scf.if %2 {
      %cst = arith.constant 0.000000e+00 : f32
      %6 = vector.broadcast %cst : f32 to vector<8x128xf32>
      %c0_i32_2 = arith.constant 0 : i32
      %c8_i32 = arith.constant 8 : i32
      %7 = arith.muli %c0_i32_2, %c8_i32 : i32
      %8 = tpu.assume_multiple %7, 8 : i32
      %9 = arith.index_cast %8 : i32 to index
      %c0 = arith.constant 0 : index
      %10 = vector.load %arg1[%9, %c0] : memref<8x128xf32, #tpu.memory_space<vmem>>, vector<8x128xf32>
      %11 = arith.index_cast %8 : i32 to index
      %c0_3 = arith.constant 0 : index
      %12 = vector.load %arg2[%11, %c0_3] : memref<8x128xf32, #tpu.memory_space<vmem>>, vector<8x128xf32>
      %13 = arith.subf %12, %10 : vector<8x128xf32>
      %14 = math.absf %13 : vector<8x128xf32>
      %cst_4 = arith.constant 1.000000e+01 : f32
      %15 = vector.broadcast %cst_4 : f32 to vector<8x128xf32>
      %16 = arith.cmpf olt, %14, %15 : vector<8x128xf32>
      %cst_5 = arith.constant 5.000000e-01 : f32
      %17 = vector.broadcast %cst_5 : f32 to vector<8x128xf32>
      %18 = arith.mulf %14, %17 : vector<8x128xf32>
      %cst_6 = arith.constant 1.000000e+00 : f32
      %19 = vector.broadcast %cst_6 : f32 to vector<8x128xf32>
      %20 = arith.addf %19, %18 : vector<8x128xf32>
      %21 = math.log %20 : vector<8x128xf32>
      %cst_7 = arith.constant 1.000000e+01 : f32
      %22 = vector.broadcast %cst_7 : f32 to vector<8x128xf32>
      %23 = arith.mulf %22, %21 : vector<8x128xf32>
      %cst_8 = arith.constant -7.9175949 : f32
      %24 = vector.broadcast %cst_8 : f32 to vector<8x128xf32>
      %25 = arith.subf %14, %24 : vector<8x128xf32>
      %26 = arith.select %16, %23, %25 : vector<8x128xi1>, vector<8x128xf32>
      %27 = vector.shape_cast %26 : vector<8x128xf32> to vector<1x8x128xf32>
      %cst_9 = arith.constant dense<0.000000e+00> : vector<8x128xf32>
      %28 = vector.multi_reduction <add>, %27, %cst_9 [0] : vector<1x8x128xf32> to vector<8x128xf32>
      %29 = arith.addf %6, %28 : vector<8x128xf32>
      %c1_i32_10 = arith.constant 1 : i32
      %30 = vector.shape_cast %29 : vector<8x128xf32> to vector<1x8x128xf32>
      %c0_11 = arith.constant 0 : index
      %c0_12 = arith.constant 0 : index
      %c0_13 = arith.constant 0 : index
      %31 = vector.load %arg3[%c0_11, %c0_12, %c0_13] : memref<1x8x128xf32, #tpu.memory_space<vmem>>, vector<1x8x128xf32>
      tpu.vector_store %arg3[%c0_11, %c0_12, %c0_13], %30 {strides = array<i32>} : memref<1x8x128xf32, #tpu.memory_space<vmem>>, vector<1x8x128xf32>,
    } else {
    }
    %c1_i32_0 = arith.constant 1 : i32
    %3 = arith.cmpi eq, %arg0, %c1_i32_0 : i32
    %4 = arith.extui %3 : i1 to i32
    %c0_i32_1 = arith.constant 0 : i32
    %5 = arith.cmpi ne, %4, %c0_i32_1 : i32
    scf.if %5 {
      %cst = arith.constant 0.000000e+00 : f32
      %6 = vector.broadcast %cst : f32 to vector<8x128xf32>
      %c0_i32_2 = arith.constant 0 : i32
      %c8_i32 = arith.constant 8 : i32
      %7 = arith.muli %c0_i32_2, %c8_i32 : i32
      %8 = tpu.assume_multiple %7, 8 : i32
      %9 = arith.index_cast %8 : i32 to index
      %c0 = arith.constant 0 : index
      %10 = vector.load %arg1[%9, %c0] : memref<8x128xf32, #tpu.memory_space<vmem>>, vector<8x128xf32>
      %11 = arith.index_cast %8 : i32 to index
      %c0_3 = arith.constant 0 : index
      %12 = vector.load %arg2[%11, %c0_3] : memref<8x128xf32, #tpu.memory_space<vmem>>, vector<8x128xf32>
      %13 = arith.subf %12, %10 : vector<8x128xf32>
      %14 = math.absf %13 : vector<8x128xf32>
      %cst_4 = arith.constant 1.000000e+01 : f32
      %15 = vector.broadcast %cst_4 : f32 to vector<8x128xf32>
      %16 = arith.cmpf olt, %14, %15 : vector<8x128xf32>
      %cst_5 = arith.constant 5.000000e-01 : f32
      %17 = vector.broadcast %cst_5 : f32 to vector<8x128xf32>
      %18 = arith.mulf %14, %17 : vector<8x128xf32>
      %cst_6 = arith.constant 1.000000e+00 : f32
      %19 = vector.broadcast %cst_6 : f32 to vector<8x128xf32>
      %20 = arith.addf %19, %18 : vector<8x128xf32>
      %21 = math.log %20 : vector<8x128xf32>
      %cst_7 = arith.constant 1.000000e+01 : f32
      %22 = vector.broadcast %cst_7 : f32 to vector<8x128xf32>
      %23 = arith.mulf %22, %21 : vector<8x128xf32>
      %cst_8 = arith.constant -7.9175949 : f32
      %24 = vector.broadcast %cst_8 : f32 to vector<8x128xf32>
      %25 = arith.subf %14, %24 : vector<8x128xf32>
      %26 = arith.select %16, %23, %25 : vector<8x128xi1>, vector<8x128xf32>
      %27 = tpu.iota {dimensions = array<i32: 0>} : vector<8x128xi32>
      %c8_i32_9 = arith.constant 8 : i32
      %28 = arith.muli %arg0, %c8_i32_9 : i32
      %29 = vector.broadcast %28 : i32 to vector<8x128xi32>
      %30 = arith.addi %27, %29 : vector<8x128xi32>
      %31 = vector.broadcast %8 : i32 to vector<8x128xi32>
      %32 = arith.addi %30, %31 : vector<8x128xi32>
      %c16_i32 = arith.constant 16 : i32
      %33 = vector.broadcast %c16_i32 : i32 to vector<8x128xi32>
      %34 = arith.cmpi slt, %32, %33 : vector<8x128xi32>
      %cst_10 = arith.constant 0.000000e+00 : f32
      %35 = vector.broadcast %cst_10 : f32 to vector<8x128xf32>
      %36 = arith.select %34, %26, %35 : vector<8x128xi1>, vector<8x128xf32>
      %37 = vector.shape_cast %36 : vector<8x128xf32> to vector<1x8x128xf32>
      %cst_11 = arith.constant dense<0.000000e+00> : vector<8x128xf32>
      %38 = vector.multi_reduction <add>, %37, %cst_11 [0] : vector<1x8x128xf32> to vector<8x128xf32>
      %39 = arith.addf %6, %38 : vector<8x128xf32>
      %c1_i32_12 = arith.constant 1 : i32
      %40 = vector.shape_cast %39 : vector<8x128xf32> to vector<1x8x128xf32>
      %c0_13 = arith.constant 0 : index
      %c0_14 = arith.constant 0 : index
      %c0_15 = arith.constant 0 : index
      %41 = vector.load %arg3[%c0_13, %c0_14, %c0_15] : memref<1x8x128xf32, #tpu.memory_space<vmem>>, vector<1x8x128xf32>
      tpu.vector_store %arg3[%c0_13, %c0_14, %c0_15], %40 {strides = array<i32>} : memref<1x8x128xf32, #tpu.memory_space<vmem>>, vector<1x8x128xf32>,
    } else {
    }
    return
  }
  func.func @transform_0(%arg0: i32) -> (i32, i32) {
    %c0_i32 = arith.constant 0 : i32
    %c0_i32_0 = arith.constant 0 : i32
    return %arg0, %c0_i32 : i32, i32
  }
  func.func @transform_1(%arg0: i32) -> (i32, i32) {
    %c0_i32 = arith.constant 0 : i32
    %c0_i32_0 = arith.constant 0 : i32
    return %arg0, %c0_i32 : i32, i32
  }
  func.func @transform_2(%arg0: i32) -> (i32, i32, i32) {
    %c0_i32 = arith.constant 0 : i32
    %c0_i32_0 = arith.constant 0 : i32
    %c0_i32_1 = arith.constant 0 : i32
    return %arg0, %c0_i32, %c0_i32_0 : i32, i32, i32
  }
}

</mosaic_0001>

<llo_original>
// kernel: tpu_custom_call.1
$region0: #{tpu_custom_call.1}
  #allocation0 [shape = 'u32[]', space=smem, size = 0x4, offset = 0x4, fixed_abs, tag = 'smem constant byte address 0x4 - core index']
  #allocation1 [shape = 'u32[72,128]{1,0:T(1,128)}', space=vmem, size = 0x9000, scoped, tag = 'internal scratch']
  %s0 = inlined_call_operand.hbm [shape: f32[16,128], index: 0, kind: input, shape index: {}]
  %s1 = inlined_call_operand.hbm [shape: f32[16,128], index: 1, kind: input, shape index: {}]
  %s2 = inlined_call_operand.hbm [shape: f32[2,8,128], index: 2, kind: output, shape index: {}]
  %s3 = sld [smem:[#allocation0]]
  $region57: #{tpu_custom_call.1} parent=0
    _
  %s5 = ssub.s32 1, %s3
  %s6 = scalar_select 0, %s5, %s3
  $region1: #{tpu_custom_call.1} parent=0
    #allocation2 [shape = 'u8[8192]{0}', space=vmem, size = 0x2000, scoped, tag = 'input window, operand 0']
    #allocation3 [shape = 's32[2]{0}', space=sflag, size = 0x8, scoped, tag = 'scoped memory for tpu_custom_call.1']
    #allocation4 [shape = 's32[2]{0}', space=sflag, size = 0x8, scoped, tag = 'scoped memory for tpu_custom_call.1']
    #allocation5 [shape = 'u8[8192]{0}', space=vmem, size = 0x2000, scoped, tag = 'input window, operand 1']
    #allocation6 [shape = 's32[2]{0}', space=sflag, size = 0x8, scoped, tag = 'scoped memory for tpu_custom_call.1']
    #allocation7 [shape = 'u8[8192]{0}', space=vmem, size = 0x2000, scoped, tag = 'output window, operand 0']
    %7 = vsyncpa [#allocation3], 0
    %s8 = scalar_lea.sflag [#allocation3], 1
    %9 = vsyncpa %s8, 0
    %10 = vsyncpa [#allocation6], 0
    %s11 = scalar_lea.sflag [#allocation6], 1
    %12 = vsyncpa %s11, 0
    %13 = vsyncpa [#allocation4], 0
    %s14 = scalar_lea.sflag [#allocation4], 1
    %15 = vsyncpa %s14, 0
    loop: start=0, step=1, limit=4
    $region2: #{tpu_custom_call.1} parent=1 // loop_pre_header
      _
    $region3: #{tpu_custom_call.1} parent=1 // loop_header
      %s17 = sphi 0, %s21
      %p18 = scmp.ge.s32.totalorder %s17, 4
      %s27 = sphi 0, %s29
      %s30 = sphi 0, %s27
      %s31 = sphi 0, %s30
      %s47 = sphi 0, %s31
      %s53 = sphi 0, %s55
      %s56 = sphi 0, %s53
      %s57 = sphi 0, %s56
      %s73 = sphi 0, %s57
      %s79 = sphi 0, %s81
      %s82 = sphi 0, %s79
      %s83 = sphi 0, %s82
      %s99 = sphi 0, %s83
    $region4: #{tpu_custom_call.1} parent=1 // loop_header_branch
      %20 = sbr.rel (%p18) target = $region8
    $region5: #{tpu_custom_call.1} parent=1 // loop_body
      %s22 = ssub.s32 %s17, 1
      %s23 = ssub.s32 %s17, 2
      %s24 = sadd.s32 %s17, 1
      %s25 = ssub.s32 %s17, %s24
      %p26 = scmp.eq.s32.totalorder %s25, 0
      %s28 = sadd.s32 %s27, 1
      %s29 = scalar_select %p26, %s27, %s28
      %p32 = pneg %p26
      %p33 = scmp.eq.s32.totalorder %s17, 1
      %p34 = por %p32, %p33
      %p35 = scmp.ne.s32.totalorder %s27, %s30
      %p36 = scmp.eq.s32.totalorder %s17, 0
      %p37 = por %p35, %p36
      %p38 = scmp.ne.s32.totalorder %s27, %s30
      %p39 = scmp.eq.s32.totalorder %s22, 1
      %p40 = por %p38, %p39
      %p41 = scmp.ne.s32.totalorder %s30, %s31
      %p42 = scmp.eq.s32.totalorder %s22, 0
      %p43 = por %p41, %p42
      %p44 = scmp.ne.s32.totalorder %s30, %s31
      %p45 = scmp.eq.s32.totalorder %s23, 1
      %p46 = por %p44, %p45
      %p48 = scmp.ne.s32.totalorder %s31, %s47
      %p49 = scmp.eq.s32.totalorder %s23, 0
      %p50 = por %p48, %p49
      %s51 = ssub.s32 %s17, %s24
      %p52 = scmp.eq.s32.totalorder %s51, 0
      %s54 = sadd.s32 %s53, 1
      %s55 = scalar_select %p52, %s53, %s54
      %p58 = pneg %p52
      %p59 = scmp.eq.s32.totalorder %s17, 1
      %p60 = por %p58, %p59
      %p61 = scmp.ne.s32.totalorder %s53, %s56
      %p62 = scmp.eq.s32.totalorder %s17, 0
      %p63 = por %p61, %p62
      %p64 = scmp.ne.s32.totalorder %s53, %s56
      %p65 = scmp.eq.s32.totalorder %s22, 1
      %p66 = por %p64, %p65
      %p67 = scmp.ne.s32.totalorder %s56, %s57
      %p68 = scmp.eq.s32.totalorder %s22, 0
      %p69 = por %p67, %p68
      %p70 = scmp.ne.s32.totalorder %s56, %s57
      %p71 = scmp.eq.s32.totalorder %s23, 1
      %p72 = por %p70, %p71
      %p74 = scmp.ne.s32.totalorder %s57, %s73
      %p75 = scmp.eq.s32.totalorder %s23, 0
      %p76 = por %p74, %p75
      %s77 = ssub.s32 %s17, %s24
      %p78 = scmp.eq.s32.totalorder %s77, 0
      %s80 = sadd.s32 %s79, 1
      %s81 = scalar_select %p78, %s79, %s80
      %p84 = pneg %p78
      %p85 = scmp.eq.s32.totalorder %s17, 1
      %p86 = por %p84, %p85
      %p87 = scmp.ne.s32.totalorder %s79, %s82
      %p88 = scmp.eq.s32.totalorder %s17, 0
      %p89 = por %p87, %p88
      %p90 = scmp.ne.s32.totalorder %s79, %s82
      %p91 = scmp.eq.s32.totalorder %s22, 1
      %p92 = por %p90, %p91
      %p93 = scmp.ne.s32.totalorder %s82, %s83
      %p94 = scmp.eq.s32.totalorder %s22, 0
      %p95 = por %p93, %p94
      %p96 = scmp.ne.s32.totalorder %s82, %s83
      %p97 = scmp.eq.s32.totalorder %s23, 1
      %p98 = por %p96, %p97
      %p100 = scmp.ne.s32.totalorder %s83, %s99
      %p101 = scmp.eq.s32.totalorder %s23, 0
      %p102 = por %p100, %p101
      %p103 = scmp.le.s32.totalorder 1, %s17
      %p104 = scmp.lt.s32.totalorder %s17, 3
      %p105 = pnand %p103, %p104
      %p106 = pneg %p105
      // Predicated region
      $region9: #{tpu_custom_call.1} parent=5 // pred_check
        _
      $region10: #{tpu_custom_call.1} parent=5 // pred_check_branch
        %108 = sbr.rel (%p105) target = $region12
      $region11: #{tpu_custom_call.1} parent=5 // pred_region
        %s109 = ssub.s32 %s17, 1
      $region12: #{tpu_custom_call.1} parent=5 // pred_fallthru
        _
      %p110 = scmp.lt.s32.totalorder %s17, 2
      // Predicated region
      $region13: #{tpu_custom_call.1} parent=5 // pred_check
        %p111 = pneg %p110
      $region14: #{tpu_custom_call.1} parent=5 // pred_check_branch
        %113 = sbr.rel (%p111) target = $region16
      $region15: #{tpu_custom_call.1} parent=5 // pred_region
        // Predicated region
        $region17: #{tpu_custom_call.1} parent=15 // pred_check
          %p114 = pneg %p37
        $region18: #{tpu_custom_call.1} parent=15 // pred_check_branch
          %116 = sbr.rel (%p114) target = $region20
        $region19: #{tpu_custom_call.1} parent=15 // pred_region
          %s117 = sand.u32 %s27, 1
          %s118 = scalar_lea.sflag [#allocation3], %s117
          %s119 = sand.u32 %s27, 1
          %s120 = smul.addr %s119, 8
          %s121 = scalar_lea.vmem [#allocation2], %s120
          %123 = vsyncadd %s118, 0
          %s124 = smul.addr %s17, 8
          %s125 = scalar_lea.hbm %s0, %s124
          %s127 = sshll.u32 %s125, 4
          %s128 = int_to_ptr.hbm [resolvable:$true] %s127
          %s129 = sshll.u32 %s121, 4
          %s130 = int_to_ptr.vmem [resolvable:$true] %s129
          %132 = dma.hbm_to_vmem [thread:$0]  %s128, 128, %s130, %s118
        $region20: #{tpu_custom_call.1} parent=15 // pred_fallthru
          _
        // Predicated region
        $region21: #{tpu_custom_call.1} parent=15 // pred_check
          %p133 = pneg %p63
        $region22: #{tpu_custom_call.1} parent=15 // pred_check_branch
          %135 = sbr.rel (%p133) target = $region24
        $region23: #{tpu_custom_call.1} parent=15 // pred_region
          %s136 = sand.u32 %s53, 1
          %s137 = scalar_lea.sflag [#allocation6], %s136
          %s138 = sand.u32 %s53, 1
          %s139 = smul.addr %s138, 8
          %s140 = scalar_lea.vmem [#allocation5], %s139
          %142 = vsyncadd %s137, 0
          %s143 = smul.addr %s17, 8
          %s144 = scalar_lea.hbm %s1, %s143
          %s146 = sshll.u32 %s144, 4
          %s147 = int_to_ptr.hbm [resolvable:$true] %s146
          %s148 = sshll.u32 %s140, 4
          %s149 = int_to_ptr.vmem [resolvable:$true] %s148
          %151 = dma.hbm_to_vmem [thread:$0]  %s147, 128, %s149, %s137
        $region24: #{tpu_custom_call.1} parent=15 // pred_fallthru
          _
      $region16: #{tpu_custom_call.1} parent=5 // pred_fallthru
        _
      %p152 = scmp.le.s32.totalorder 1, %s17
      %p153 = scmp.lt.s32.totalorder %s17, 3
      %p154 = pnand %p152, %p153
      %p155 = pneg %p154
      // Predicated region
      $region25: #{tpu_custom_call.1} parent=5 // pred_check
        _
      $region26: #{tpu_custom_call.1} parent=5 // pred_check_branch
        %157 = sbr.rel (%p154) target = $region28
      $region27: #{tpu_custom_call.1} parent=5 // pred_region
        %s158 = ssub.s32 %s17, 1
        %s159 = sand.u32 %s30, 1
        %s160 = scalar_lea.sflag [#allocation3], %s159
        %s161 = sand.u32 %s30, 1
        %s162 = smul.addr %s161, 8
        %s163 = scalar_lea.vmem [#allocation2], %s162
        // Predicated region
        $region29: #{tpu_custom_call.1} parent=27 // pred_check
          %p164 = pneg %p43
        $region30: #{tpu_custom_call.1} parent=27 // pred_check_branch
          %166 = sbr.rel (%p164) target = $region32
        $region31: #{tpu_custom_call.1} parent=27 // pred_region
          %168 = dma.done %s160, 128
        $region32: #{tpu_custom_call.1} parent=27 // pred_fallthru
          _
        %s169 = sand.u32 %s56, 1
        %s170 = scalar_lea.sflag [#allocation6], %s169
        %s171 = sand.u32 %s56, 1
        %s172 = smul.addr %s171, 8
        %s173 = scalar_lea.vmem [#allocation5], %s172
        // Predicated region
        $region33: #{tpu_custom_call.1} parent=27 // pred_check
          %p174 = pneg %p69
        $region34: #{tpu_custom_call.1} parent=27 // pred_check_branch
          %176 = sbr.rel (%p174) target = $region36
        $region35: #{tpu_custom_call.1} parent=27 // pred_region
          %178 = dma.done %s170, 128
        $region36: #{tpu_custom_call.1} parent=27 // pred_fallthru
          _
        %s179 = sand.u32 %s30, 1
        %s180 = scalar_lea.sflag [#allocation3], %s179
        %s181 = sand.u32 %s30, 1
        %s182 = smul.addr %s181, 8
        %s183 = scalar_lea.vmem [#allocation2], %s182
        %p184 = pneg %p43
        %p185 = pneg %p40
        %s186 = sand.u32 %s56, 1
        %s187 = scalar_lea.sflag [#allocation6], %s186
        %s188 = sand.u32 %s56, 1
        %s189 = smul.addr %s188, 8
        %s190 = scalar_lea.vmem [#allocation5], %s189
        %p191 = pneg %p69
        %p192 = pneg %p66
        %p193 = pneg %p95
        %p194 = pneg %p92
        %s195 = sand.u32 %s82, 1
        %s196 = scalar_lea.sflag [#allocation4], %s195
        %s197 = sand.u32 %s82, 1
        %s198 = smul.addr %s197, 8
        %s199 = scalar_lea.vmem [#allocation7], %s198
        %p200 = scmp.lt.s32.totalorder %s22, 1
        // Predicated region
        $region37: #{tpu_custom_call.1} parent=27 // pred_check
          %p201 = pneg %p200
        $region38: #{tpu_custom_call.1} parent=27 // pred_check_branch
          %203 = sbr.rel (%p201) target = $region40
        $region39: #{tpu_custom_call.1} parent=27 // pred_region
          %v204 = vld [vmem:[%s163] sm:$0xff]
          %v205 = vld [vmem:[%s173] sm:$0xff]
          %v206 = vsub.f32 %v205, %v204
          %v207 = vand.u32 2147483647, %v206
          %vm208 = vcmp.lt.f32.partialorder %v207, 10.0
          %v209 = vmul.f32 %v207, 0.5
          %v210 = vadd.f32 %v209, 1.0
          %v211 = vlog2.pop %v210
          %v212 = vmul.f32 %v211, 0.6931472
          %v213 = vmul.f32 %v212, 10.0
          %v214 = vsub.f32 %v207, -7.917595
          %v215 = vsel %vm208, %v213, %v214
          %v216 = vadd.f32 %v215, 0.0
          %v217 = vadd.f32 %v216, 0.0
          %218 = vst [vmem:[%s199] sm:$0xff] %v217
        $region40: #{tpu_custom_call.1} parent=27 // pred_fallthru
          _
        %p219 = scmp.eq.s32.totalorder %s22, 1
        // Predicated region
        $region41: #{tpu_custom_call.1} parent=27 // pred_check
          %p220 = pneg %p219
        $region42: #{tpu_custom_call.1} parent=27 // pred_check_branch
          %222 = sbr.rel (%p220) target = $region44
        $region43: #{tpu_custom_call.1} parent=27 // pred_region
          %v223 = vld [vmem:[%s163] sm:$0xff]
          %v224 = vld [vmem:[%s173] sm:$0xff]
          %v225 = vsub.f32 %v224, %v223
          %v226 = vand.u32 2147483647, %v225
          %vm227 = vcmp.lt.f32.partialorder %v226, 10.0
          %v228 = vmul.f32 %v226, 0.5
          %v229 = vadd.f32 %v228, 1.0
          %v230 = vlog2.pop %v229
          %v231 = vmul.f32 %v230, 0.6931472
          %v232 = vmul.f32 %v231, 10.0
          %v233 = vsub.f32 %v226, -7.917595
          %v234 = vsel %vm227, %v232, %v233
          %v235 = vlaneseq
          %v236 = vshrl.u32 %v235, 7
          %s237 = smul.u32 %s22, 8
          %v238 = vstv %s237
          %v239 = vadd.s32 %v236, %v238
          %v240 = vstv 0
          %v241 = vadd.s32 %v239, %v240
          %vm242 = vcmp.lt.s32.totalorder %v241, 16
          %v243 = vsel %vm242, %v234, 0.0
          %v244 = vadd.f32 %v243, 0.0
          %v245 = vadd.f32 %v244, 0.0
          %246 = vst [vmem:[%s199] sm:$0xff] %v245
        $region44: #{tpu_custom_call.1} parent=27 // pred_fallthru
          _
        %s247 = sand.u32 %s82, 1
        %s248 = scalar_lea.sflag [#allocation4], %s247
        %s249 = sand.u32 %s82, 1
        %s250 = smul.addr %s249, 8
        %s251 = scalar_lea.vmem [#allocation7], %s250
        // Predicated region
        $region45: #{tpu_custom_call.1} parent=27 // pred_check
          %p252 = pneg %p92
        $region46: #{tpu_custom_call.1} parent=27 // pred_check_branch
          %254 = sbr.rel (%p252) target = $region48
        $region47: #{tpu_custom_call.1} parent=27 // pred_region
          %256 = vsyncadd %s248, 0
          %s257 = smul.addr %s22, 8
          %s258 = scalar_lea.hbm %s2, %s257
          %s260 = sshll.u32 %s251, 4
          %s261 = int_to_ptr.vmem [resolvable:$true] %s260
          %s262 = sshll.u32 %s258, 4
          %s263 = int_to_ptr.hbm [resolvable:$true] %s262
          %265 = dma.vmem_to_hbm [thread:$0]  %s261, 128, %s263, %s248
        $region48: #{tpu_custom_call.1} parent=27 // pred_fallthru
          _
      $region28: #{tpu_custom_call.1} parent=5 // pred_fallthru
        _
      %p266 = scmp.le.s32.totalorder 2, %s17
      // Predicated region
      $region49: #{tpu_custom_call.1} parent=5 // pred_check
        %p267 = pneg %p266
      $region50: #{tpu_custom_call.1} parent=5 // pred_check_branch
        %269 = sbr.rel (%p267) target = $region52
      $region51: #{tpu_custom_call.1} parent=5 // pred_region
        %s270 = ssub.s32 %s17, 2
        // Predicated region
        $region53: #{tpu_custom_call.1} parent=51 // pred_check
          %p271 = pneg %p98
        $region54: #{tpu_custom_call.1} parent=51 // pred_check_branch
          %273 = sbr.rel (%p271) target = $region56
        $region55: #{tpu_custom_call.1} parent=51 // pred_region
          %s274 = sand.u32 %s83, 1
          %s275 = scalar_lea.sflag [#allocation4], %s274
          %s276 = sand.u32 %s83, 1
          %s277 = smul.addr %s276, 8
          %s278 = scalar_lea.vmem [#allocation7], %s277
          %280 = dma.done %s275, 128
        $region56: #{tpu_custom_call.1} parent=51 // pred_fallthru
          _
      $region52: #{tpu_custom_call.1} parent=5 // pred_fallthru
        _
    $region6: #{tpu_custom_call.1} parent=1 // loop_footer
      %s21 = sadd.s32 1, %s17
    $region7: #{tpu_custom_call.1} parent=1 // loop_footer_branch
      %16 = sbr.rel target = $region3
    $region8: #{tpu_custom_call.1} parent=1 // loop_exit
      _
    %281 = vsyncpa [#allocation3], 1
    %s282 = scalar_lea.sflag [#allocation3], 1
    %283 = vsyncpa %s282, 1
    %284 = vsyncpa [#allocation6], 1
    %s285 = scalar_lea.sflag [#allocation6], 1
    %286 = vsyncpa %s285, 1
    %287 = vsyncpa [#allocation4], 1
    %s288 = scalar_lea.sflag [#allocation4], 1
    %289 = vsyncpa %s288, 1

</llo_original>
